<compile_context>
chip_gen: v6e
topology: v6e:2x2x1
jax: 0.10.0
libtpu: 0.0.40
codegen_flags: <defaults>
</compile_context>

<pallas_src>
import jax
import jax.numpy as jnp
from jax.experimental import pallas as pl
from jax.experimental.pallas import tpu as pltpu


def _build_positional_encodings(num_patches: int = 16) -> jnp.ndarray:
    """Deterministic replica of PositionalEncodingAbs.__init__ table, shape (P, 3)."""
    n = num_patches ** 0.5
    sub_n = n ** 0.5
    rows = []
    for i in range(num_patches):
        row = i // n            # float floor-division, same as the PyTorch code
        column = i % n
        grid = (row // sub_n) * sub_n + (column // sub_n)
        rows.append([row, column, grid])
    pe = jnp.asarray(rows, dtype=jnp.float32) / num_patches          # (P, 3)
    return pe


def _concat_kernel(x_ref, pe_ref, o_ref):
    # x_ref : (B, P, D)   pe_ref : (1, P, E)   o_ref : (B, P, D + E)
    B, P, _ = x_ref.shape
    E = pe_ref.shape[-1]
    pe = jnp.broadcast_to(pe_ref[...], (B, P, E))
    # Build the full output tile in-register, emit one store.
    o_ref[...] = jnp.concatenate([x_ref[...], pe], axis=-1)


def positional_encoding_abs(x: jnp.ndarray, pe_table: jnp.ndarray) -> jnp.ndarray:
    """x: (B, P, D), pe_table: (P, E) -> (B, P, D+E) (== torch.cat((x, pe), 2))."""
    B, P, D = x.shape
    assert pe_table.ndim == 2 and pe_table.shape[0] == P, pe_table.shape
    E = pe_table.shape[1]

    # Single copy of the constant table, matching x's dtype (no silent downcast).
    pe = pe_table.astype(x.dtype)[None]                               # (1, P, E)

    out_shape = jax.ShapeDtypeStruct((B, P, D + E), x.dtype)

    # Whole problem fits in VMEM -> one grid step, full-array blocks.
    return pl.pallas_call(
        _concat_kernel,
        out_shape=out_shape,
        grid_spec=pltpu.PrefetchScalarGridSpec(
            num_scalar_prefetch=0,
            grid=(1,),
            in_specs=[
                pl.BlockSpec((B, P, D), lambda i: (0, 0, 0)),
                pl.BlockSpec((1, P, E), lambda i: (0, 0, 0)),
            ],
            out_specs=pl.BlockSpec((B, P, D + E), lambda i: (0, 0, 0)),
        ),
        compiler_params=pltpu.CompilerParams(
            dimension_semantics=("arbitrary",)
        ),
    )(x, pe)


if __name__ == "__main__":
    num_patches = 16
    hidden = 32
    batch = 10  # fixed by the module (__init__ stacks the PE table 10x)

    key = jax.random.PRNGKey(0)
    x = jax.random.normal(key, (batch, num_patches, hidden), dtype=jnp.float32)

    pe_table = _build_positional_encodings(num_patches)               # (P, 3)

    out = positional_encoding_abs(x, pe_table)
    out = jax.block_until_ready(out)

    # Reference: mirrors torch.cat((x, stacked_pe), dim=2).
    pe_stacked = jnp.broadcast_to(pe_table[None], (batch, num_patches, 3))
    ref = jnp.concatenate((x, pe_stacked), axis=2)

    assert out.shape == (batch, num_patches, hidden + 3), out.shape
    assert out.dtype == x.dtype, out.dtype
    assert jnp.allclose(out, ref), "mismatch vs reference concat"

    print("KERNEL_OK")
</pallas_src>

<mosaic_0001>
module attributes {stable_mosaic.version = 11 : i64} {
  func.func @_concat_kernel(%arg0: i32, %arg1: memref<10x16x32xf32, #tpu.memory_space<vmem>>, %arg2: memref<1x16x3xf32, #tpu.memory_space<vmem>>, %arg3: memref<10x16x35xf32, #tpu.memory_space<vmem>>) attributes {dimension_semantics = [#tpu.dimension_semantics<arbitrary>], iteration_bounds = array<i64: 1>, scalar_prefetch = 0 : i64, scratch_operands = 0 : i64, tpu.core_type = #tpu.core_type<tc>, window_params = [{pipeline_mode = #tpu.pipeline_mode<synchronous>, transform_indices = @transform_0, window_bounds = array<i64: 10, 16, 32>}, {pipeline_mode = #tpu.pipeline_mode<synchronous>, transform_indices = @transform_1, window_bounds = array<i64: 1, 16, 3>}, {pipeline_mode = #tpu.pipeline_mode<synchronous>, transform_indices = @transform_2, window_bounds = array<i64: 10, 16, 35>}]} {
    %c0 = arith.constant 0 : index
    %c0_0 = arith.constant 0 : index
    %c0_1 = arith.constant 0 : index
    %0 = vector.load %arg2[%c0, %c0_0, %c0_1] : memref<1x16x3xf32, #tpu.memory_space<vmem>>, vector<1x16x3xf32>
    %1 = vector.shape_cast %0 : vector<1x16x3xf32> to vector<1x16x3xf32>
    %2 = vector.broadcast %1 : vector<1x16x3xf32> to vector<10x16x3xf32>
    %c0_2 = arith.constant 0 : index
    %c0_3 = arith.constant 0 : index
    %c0_4 = arith.constant 0 : index
    %3 = vector.load %arg1[%c0_2, %c0_3, %c0_4] : memref<10x16x32xf32, #tpu.memory_space<vmem>>, vector<10x16x32xf32>
    %4 = tpu.concatenate %3, %2 in 2 : vector<10x16x32xf32>, vector<10x16x3xf32> -> vector<10x16x35xf32>
    %c0_5 = arith.constant 0 : index
    %c0_6 = arith.constant 0 : index
    %c0_7 = arith.constant 0 : index
    %5 = vector.load %arg3[%c0_5, %c0_6, %c0_7] : memref<10x16x35xf32, #tpu.memory_space<vmem>>, vector<10x16x35xf32>
    tpu.vector_store %arg3[%c0_5, %c0_6, %c0_7], %4 {strides = array<i32>} : memref<10x16x35xf32, #tpu.memory_space<vmem>>, vector<10x16x35xf32>,
    return
  }
  func.func @transform_0(%arg0: i32) -> (i32, i32, i32) {
    %c0_i32 = arith.constant 0 : i32
    %c0_i32_0 = arith.constant 0 : i32
    %c0_i32_1 = arith.constant 0 : i32
    %c0_i32_2 = arith.constant 0 : i32
    return %c0_i32, %c0_i32_0, %c0_i32_1 : i32, i32, i32
  }
  func.func @transform_1(%arg0: i32) -> (i32, i32, i32) {
    %c0_i32 = arith.constant 0 : i32
    %c0_i32_0 = arith.constant 0 : i32
    %c0_i32_1 = arith.constant 0 : i32
    %c0_i32_2 = arith.constant 0 : i32
    return %c0_i32, %c0_i32_0, %c0_i32_1 : i32, i32, i32
  }
  func.func @transform_2(%arg0: i32) -> (i32, i32, i32) {
    %c0_i32 = arith.constant 0 : i32
    %c0_i32_0 = arith.constant 0 : i32
    %c0_i32_1 = arith.constant 0 : i32
    %c0_i32_2 = arith.constant 0 : i32
    return %c0_i32, %c0_i32_0, %c0_i32_1 : i32, i32, i32
  }
}

</mosaic_0001>

<llo_original>
// kernel: tpu_custom_call.1
$region0: #{tpu_custom_call.1}
  #allocation0 [shape = 'u32[]', space=smem, size = 0x4, offset = 0x4, fixed_abs, tag = 'smem constant byte address 0x4 - core index']
  #allocation1 [shape = 'u32[144,128]{1,0:T(1,128)}', space=vmem, size = 0x12000, scoped, tag = 'internal scratch']
  %s0 = inlined_call_operand.hbm [shape: f32[10,16,32], index: 0, kind: input, shape index: {}]
  %s1 = inlined_call_operand.vmem [shape: f32[1,16,3], index: 1, kind: input, shape index: {}]
  %s2 = inlined_call_operand.hbm [shape: f32[10,16,35], index: 2, kind: output, shape index: {}]
  %s3 = sld [smem:[#allocation0]]
  $region22: #{tpu_custom_call.1} parent=0
    _
  %s5 = ssub.s32 1, %s3
  %s6 = scalar_select 0, %s5, %s3
  $region1: #{tpu_custom_call.1} parent=0
    #allocation2 [shape = 'u8[81920]{0}', space=vmem, size = 0x14000, scoped, tag = 'input window, operand 0, single buffered']
    #allocation3 [shape = 's32[1]{0}', space=sflag, size = 0x4, scoped, tag = 'scoped memory for tpu_custom_call.1']
    #allocation4 [shape = 's32[1]{0}', space=sflag, size = 0x4, scoped, tag = 'scoped memory for tpu_custom_call.1']
    #allocation5 [shape = 'u8[81920]{0}', space=vmem, size = 0x14000, scoped, tag = 'output window, operand 0, single buffered']
    %7 = vsyncpa [#allocation3], 0
    %8 = vsyncpa [#allocation4], 0
    // Predicated region
    $region2: #{tpu_custom_call.1} parent=1 // pred_check
      _
    $region3: #{tpu_custom_call.1} parent=1 // pred_check_branch
      %10 = sbr.rel (0) target = $region5
    $region4: #{tpu_custom_call.1} parent=1 // pred_region
      %s12 = ssub.s32 2560, 2560
      %13 = vsyncadd [#allocation3], %s12
      %s14 = sshll.u32 [#allocation2], 4
      %s15 = int_to_ptr.vmem [resolvable:$true] %s14
      %20 = dma.hbm_to_vmem [thread:$0]  %s0, 2560, %s15, [#allocation3], 128, 128, 8
    $region5: #{tpu_custom_call.1} parent=1 // pred_fallthru
      _
    // Predicated region
    $region6: #{tpu_custom_call.1} parent=1 // pred_check
      _
    $region7: #{tpu_custom_call.1} parent=1 // pred_check_branch
      %22 = sbr.rel (0) target = $region9
    $region8: #{tpu_custom_call.1} parent=1 // pred_region
      _
    $region9: #{tpu_custom_call.1} parent=1 // pred_fallthru
      _
    // Predicated region
    $region10: #{tpu_custom_call.1} parent=1 // pred_check
      _
    $region11: #{tpu_custom_call.1} parent=1 // pred_check_branch
      %24 = sbr.rel (0) target = $region13
    $region12: #{tpu_custom_call.1} parent=1 // pred_region
      %25 = dma.done [#allocation3], 2560
    $region13: #{tpu_custom_call.1} parent=1 // pred_fallthru
      _
    %v26 = vld [vmem:[%s1] sm:$0xff]
    %v27 = vld [vmem:[%s1 + $0x8] sm:$0xff]
    %v28 = vld [vmem:[#allocation2] sm:$0xff]
    %v29 = vld [vmem:[#allocation2 + $0x8] sm:$0xff]
    %v30 = vld [vmem:[#allocation2 + $0x10] sm:$0xff]
    %v31 = vld [vmem:[#allocation2 + $0x18] sm:$0xff]
    %v32 = vld [vmem:[#allocation2 + $0x20] sm:$0xff]
    %v33 = vld [vmem:[#allocation2 + $0x28] sm:$0xff]
    %v34 = vld [vmem:[#allocation2 + $0x30] sm:$0xff]
    %v35 = vld [vmem:[#allocation2 + $0x38] sm:$0xff]
    %v36 = vld [vmem:[#allocation2 + $0x40] sm:$0xff]
    %v37 = vld [vmem:[#allocation2 + $0x48] sm:$0xff]
    %v38 = vld [vmem:[#allocation2 + $0x50] sm:$0xff]
    %v39 = vld [vmem:[#allocation2 + $0x58] sm:$0xff]
    %v40 = vld [vmem:[#allocation2 + $0x60] sm:$0xff]
    %v41 = vld [vmem:[#allocation2 + $0x68] sm:$0xff]
    %v42 = vld [vmem:[#allocation2 + $0x70] sm:$0xff]
    %v43 = vld [vmem:[#allocation2 + $0x78] sm:$0xff]
    %v44 = vld [vmem:[#allocation2 + $0x80] sm:$0xff]
    %v45 = vld [vmem:[#allocation2 + $0x88] sm:$0xff]
    %v46 = vld [vmem:[#allocation2 + $0x90] sm:$0xff]
    %v47 = vld [vmem:[#allocation2 + $0x98] sm:$0xff]
    %50 = vrot.lane.b32.xlu0 %v26, 32
    %v51 = vpop.permute.xlu0 %50
    %52 = vrot.lane.b32.xlu0 %v27, 32
    %v53 = vpop.permute.xlu0 %52
    %vm56 = vcmask 261120
    %v57 = vsel %vm56, %v28, %v51
    %v58 = vsel %vm56, %v29, %v53
    %v59 = vsel %vm56, %v30, %v51
    %v60 = vsel %vm56, %v31, %v53
    %v61 = vsel %vm56, %v32, %v51
    %v62 = vsel %vm56, %v33, %v53
    %v63 = vsel %vm56, %v34, %v51
    %v64 = vsel %vm56, %v35, %v53
    %v65 = vsel %vm56, %v36, %v51
    %v66 = vsel %vm56, %v37, %v53
    %v67 = vsel %vm56, %v38, %v51
    %v68 = vsel %vm56, %v39, %v53
    %v69 = vsel %vm56, %v40, %v51
    %v70 = vsel %vm56, %v41, %v53
    %v71 = vsel %vm56, %v42, %v51
    %v72 = vsel %vm56, %v43, %v53
    %v73 = vsel %vm56, %v44, %v51
    %v74 = vsel %vm56, %v45, %v53
    %v75 = vsel %vm56, %v46, %v51
    %v76 = vsel %vm56, %v47, %v53
    %vm77 = vcmask 285696
    %78 = vst.msk [vmem:[#allocation5] sm:$0xff] %vm77, %v57
    %79 = vst.msk [vmem:[#allocation5 + $0x8] sm:$0xff] %vm77, %v58
    %80 = vst.msk [vmem:[#allocation5 + $0x10] sm:$0xff] %vm77, %v59
    %81 = vst.msk [vmem:[#allocation5 + $0x18] sm:$0xff] %vm77, %v60
    %82 = vst.msk [vmem:[#allocation5 + $0x20] sm:$0xff] %vm77, %v61
    %83 = vst.msk [vmem:[#allocation5 + $0x28] sm:$0xff] %vm77, %v62
    %84 = vst.msk [vmem:[#allocation5 + $0x30] sm:$0xff] %vm77, %v63
    %85 = vst.msk [vmem:[#allocation5 + $0x38] sm:$0xff] %vm77, %v64
    %86 = vst.msk [vmem:[#allocation5 + $0x40] sm:$0xff] %vm77, %v65
    %87 = vst.msk [vmem:[#allocation5 + $0x48] sm:$0xff] %vm77, %v66
    %88 = vst.msk [vmem:[#allocation5 + $0x50] sm:$0xff] %vm77, %v67
    %89 = vst.msk [vmem:[#allocation5 + $0x58] sm:$0xff] %vm77, %v68
    %90 = vst.msk [vmem:[#allocation5 + $0x60] sm:$0xff] %vm77, %v69
    %91 = vst.msk [vmem:[#allocation5 + $0x68] sm:$0xff] %vm77, %v70
    %92 = vst.msk [vmem:[#allocation5 + $0x70] sm:$0xff] %vm77, %v71
    %93 = vst.msk [vmem:[#allocation5 + $0x78] sm:$0xff] %vm77, %v72
    %94 = vst.msk [vmem:[#allocation5 + $0x80] sm:$0xff] %vm77, %v73
    %95 = vst.msk [vmem:[#allocation5 + $0x88] sm:$0xff] %vm77, %v74
    %96 = vst.msk [vmem:[#allocation5 + $0x90] sm:$0xff] %vm77, %v75
    %97 = vst.msk [vmem:[#allocation5 + $0x98] sm:$0xff] %vm77, %v76
    // Predicated region
    $region14: #{tpu_custom_call.1} parent=1 // pred_check
      _
    $region15: #{tpu_custom_call.1} parent=1 // pred_check_branch
      %99 = sbr.rel (0) target = $region17
    $region16: #{tpu_custom_call.1} parent=1 // pred_region
      %s101 = ssub.s32 2560, 2560
      %102 = vsyncadd [#allocation4], %s101
      %s103 = sshll.u32 [#allocation5], 4
      %s104 = int_to_ptr.vmem [resolvable:$true] %s103
      %109 = dma.vmem_to_hbm [thread:$0]  %s104, 2560, %s2, [#allocation4], 128, 128, 8
    $region17: #{tpu_custom_call.1} parent=1 // pred_fallthru
      _
    // Predicated region
    $region18: #{tpu_custom_call.1} parent=1 // pred_check
      _
    $region19: #{tpu_custom_call.1} parent=1 // pred_check_branch
      %111 = sbr.rel (0) target = $region21
    $region20: #{tpu_custom_call.1} parent=1 // pred_region
      %112 = dma.done [#allocation4], 2560
    $region21: #{tpu_custom_call.1} parent=1 // pred_fallthru
      _
    %113 = vsyncpa [#allocation3], 1
    %114 = vsyncpa [#allocation4], 1

</llo_original>
